<compile_context>
chip_gen: v5e
topology: v5e:2x2
jax: 0.10.0
libtpu: 0.0.40
codegen_flags: <defaults>
</compile_context>

<pallas_src>
import functools

import jax
import jax.numpy as jnp
from jax.experimental import pallas as pl
from jax.experimental.pallas import tpu as pltpu


def _stack_kernel(num_blocks, num_hidden, l_in,
                  x_ref,
                  w0_ref, b0_ref,
                  wh_ref, bh_ref,
                  wg_ref, bg_ref,
                  resid_out_ref, fcast_out_ref):
    """Whole N-BEATS stack in one kernel invocation (no grid)."""
    resid = x_ref[...]
    fcast = jnp.zeros(fcast_out_ref.shape, fcast_out_ref.dtype)

    for blk in range(num_blocks):
        # FC stack: Linear(L_in -> W) + ReLU, then (W -> W) hidden layers.
        h = jnp.maximum(
            jnp.dot(resid, w0_ref[blk], preferred_element_type=jnp.float32)
            + b0_ref[blk],
            0.0)
        for l in range(num_hidden):
            h = jnp.maximum(
                jnp.dot(h, wh_ref[blk, l], preferred_element_type=jnp.float32)
                + bh_ref[blk, l],
                0.0)

        # Fused forking + generic generators: one matmul produces the
        # concatenated [backcast | forecast] along the lane axis.
        bc_fc = (jnp.dot(h, wg_ref[blk], preferred_element_type=jnp.float32)
                 + bg_ref[blk])

        # Stack recurrence.
        resid = resid - bc_fc[:, :l_in]
        fcast = fcast + bc_fc[:, l_in:]

    resid_out_ref[...] = resid
    fcast_out_ref[...] = fcast


def nbeats_stack(x, params, *, num_blocks, num_hidden,
                 input_chunk_length, target_length):
    B = x.shape[0]
    L_in, L_out = input_chunk_length, target_length

    # Fuse the forking linear layers with the GENERIC waveform generators
    # (done once in the wrapper, outside pallas_call), then concatenate
    # backcast/forecast into one weight / bias per block.
    wb = jnp.einsum("bwe,bel->bwl", params["wbl"], params["wbg"])
    bb = jnp.einsum("bxe,bel->bxl", params["bbl"], params["wbg"]) + params["bbg"]
    wf = jnp.einsum("bwe,bel->bwl", params["wfl"], params["wfg"])
    bf = jnp.einsum("bxe,bel->bxl", params["bfl"], params["wfg"]) + params["bfg"]
    wg = jnp.concatenate([wb, wf], axis=-1)   # (NB, W, L_in + L_out)
    bg = jnp.concatenate([bb, bf], axis=-1)   # (NB, 1, L_in + L_out)

    kernel = functools.partial(_stack_kernel, num_blocks, num_hidden, L_in)

    vmem_spec = pl.BlockSpec(memory_space=pltpu.MemorySpace.VMEM)

    return pl.pallas_call(
        kernel,
        out_shape=(jax.ShapeDtypeStruct((B, L_in), jnp.float32),
                   jax.ShapeDtypeStruct((B, L_out), jnp.float32)),
        in_specs=[vmem_spec] * 7,
        out_specs=(vmem_spec, vmem_spec),
    )(x.astype(jnp.float32),
      params["w0"], params["b0"], params["wh"], params["bh"], wg, bg)


def ref_stack(x, params, *, num_blocks, num_hidden, target_length):
    """Pure-JAX reference mirroring _Stack.forward (GENERIC blocks, unfused)."""
    forecast = jnp.zeros((x.shape[0], target_length), jnp.float32)
    for blk in range(num_blocks):
        h = x
        h = jax.nn.relu(h @ params["w0"][blk] + params["b0"][blk, 0])
        for l in range(num_hidden):
            h = jax.nn.relu(h @ params["wh"][blk, l] + params["bh"][blk, l, 0])
        theta_b = h @ params["wbl"][blk] + params["bbl"][blk, 0]
        theta_f = h @ params["wfl"][blk] + params["bfl"][blk, 0]
        x_hat = theta_b @ params["wbg"][blk] + params["bbg"][blk, 0]
        y_hat = theta_f @ params["wfg"][blk] + params["bfg"][blk, 0]
        forecast = forecast + y_hat
        x = x - x_hat
    return x, forecast


def init_params(key, *, num_blocks, num_layers, layer_width,
                expansion_coefficient_dim, input_chunk_length, target_length):
    """Deterministic synthetic parameters (shapes match _Block / nn.Linear)."""
    NB, NH = num_blocks, num_layers - 1
    W, E = layer_width, expansion_coefficient_dim
    L_in, L_out = input_chunk_length, target_length
    ks = jax.random.split(key, 12)
    s = 0.1
    return dict(
        w0=s * jax.random.normal(ks[0], (NB, L_in, W), jnp.float32),
        b0=s * jax.random.normal(ks[1], (NB, 1, W), jnp.float32),
        wh=s * jax.random.normal(ks[2], (NB, NH, W, W), jnp.float32),
        bh=s * jax.random.normal(ks[3], (NB, NH, 1, W), jnp.float32),
        wbl=s * jax.random.normal(ks[4], (NB, W, E), jnp.float32),
        bbl=s * jax.random.normal(ks[5], (NB, 1, E), jnp.float32),
        wfl=s * jax.random.normal(ks[6], (NB, W, E), jnp.float32),
        bfl=s * jax.random.normal(ks[7], (NB, 1, E), jnp.float32),
        wbg=s * jax.random.normal(ks[8], (NB, E, L_in), jnp.float32),
        bbg=s * jax.random.normal(ks[9], (NB, 1, L_in), jnp.float32),
        wfg=s * jax.random.normal(ks[10], (NB, E, L_out), jnp.float32),
        bfg=s * jax.random.normal(ks[11], (NB, 1, L_out), jnp.float32),
    )


if __name__ == "__main__":
    # Small N-BEATS stack config.
    num_blocks = 3
    num_layers = 3            # -> 1 input layer + 2 hidden (W,W) layers
    layer_width = 32
    expansion_coefficient_dim = 4
    input_chunk_length = 16
    target_length = 8
    batch = 8

    key = jax.random.PRNGKey(0)
    k_x, k_p = jax.random.split(key)
    x = jax.random.normal(k_x, (batch, input_chunk_length), jnp.float32)
    params = init_params(
        k_p,
        num_blocks=num_blocks, num_layers=num_layers,
        layer_width=layer_width,
        expansion_coefficient_dim=expansion_coefficient_dim,
        input_chunk_length=input_chunk_length, target_length=target_length)

    resid, fcast = nbeats_stack(
        x, params,
        num_blocks=num_blocks, num_hidden=num_layers - 1,
        input_chunk_length=input_chunk_length, target_length=target_length)
    resid = jax.block_until_ready(resid)
    fcast = jax.block_until_ready(fcast)

    resid_ref, fcast_ref = ref_stack(
        x, params,
        num_blocks=num_blocks, num_hidden=num_layers - 1,
        target_length=target_length)

    assert resid.shape == (batch, input_chunk_length)
    assert fcast.shape == (batch, target_length)
    assert jnp.allclose(resid, resid_ref, rtol=1e-3, atol=1e-3)
    assert jnp.allclose(fcast, fcast_ref, rtol=1e-3, atol=1e-3)
    print("KERNEL_OK")
</pallas_src>

<mosaic_0001>
module attributes {stable_mosaic.version = 11 : i64} {
  func.func @_stack_kernel(%arg0: memref<8x16xf32, #tpu.memory_space<vmem>>, %arg1: memref<3x16x32xf32, #tpu.memory_space<vmem>>, %arg2: memref<3x1x32xf32, #tpu.memory_space<vmem>>, %arg3: memref<3x2x32x32xf32, #tpu.memory_space<vmem>>, %arg4: memref<3x2x1x32xf32, #tpu.memory_space<vmem>>, %arg5: memref<3x32x24xf32, #tpu.memory_space<vmem>>, %arg6: memref<3x1x24xf32, #tpu.memory_space<vmem>>, %arg7: memref<8x16xf32, #tpu.memory_space<vmem>>, %arg8: memref<8x8xf32, #tpu.memory_space<vmem>>) attributes {dimension_semantics = [], scalar_prefetch = 0 : i64, scratch_operands = 0 : i64, tpu.core_type = #tpu.core_type<tc>} {
    %c0 = arith.constant 0 : index
    %c0_0 = arith.constant 0 : index
    %0 = vector.load %arg0[%c0, %c0_0] : memref<8x16xf32, #tpu.memory_space<vmem>>, vector<8x16xf32>
    %cst = arith.constant 0.000000e+00 : f32
    %1 = vector.broadcast %cst : f32 to vector<8x8xf32>
    %c0_1 = arith.constant 0 : index
    %c0_2 = arith.constant 0 : index
    %c0_3 = arith.constant 0 : index
    %2 = vector.load %arg1[%c0_1, %c0_2, %c0_3] : memref<3x16x32xf32, #tpu.memory_space<vmem>>, vector<1x16x32xf32>
    %3 = vector.shape_cast %2 : vector<1x16x32xf32> to vector<16x32xf32>
    %cst_4 = arith.constant dense<0.000000e+00> : vector<8x32xf32>
    %4 = tpu.matmul %0, %3, %cst_4 {dimension_numbers = #tpu.dot_dimension_numbers<[1], [0], [0], [1], [0, 0, 1, 1], [], []>} : vector<8x16xf32>, vector<16x32xf32>, vector<8x32xf32> -> vector<8x32xf32>
    %c0_5 = arith.constant 0 : index
    %c0_6 = arith.constant 0 : index
    %c0_7 = arith.constant 0 : index
    %5 = vector.load %arg2[%c0_5, %c0_6, %c0_7] : memref<3x1x32xf32, #tpu.memory_space<vmem>>, vector<1x1x32xf32>
    %6 = vector.shape_cast %5 : vector<1x1x32xf32> to vector<1x32xf32>
    %7 = vector.broadcast %6 : vector<1x32xf32> to vector<8x32xf32>
    %8 = arith.addf %4, %7 : vector<8x32xf32>
    %cst_8 = arith.constant 0.000000e+00 : f32
    %9 = vector.broadcast %cst_8 : f32 to vector<8x32xf32>
    %10 = arith.maximumf %8, %9 : vector<8x32xf32>
    %c0_9 = arith.constant 0 : index
    %c0_10 = arith.constant 0 : index
    %c0_11 = arith.constant 0 : index
    %c0_12 = arith.constant 0 : index
    %11 = vector.load %arg3[%c0_9, %c0_10, %c0_11, %c0_12] : memref<3x2x32x32xf32, #tpu.memory_space<vmem>>, vector<1x1x32x32xf32>
    %12 = vector.shape_cast %11 : vector<1x1x32x32xf32> to vector<32x32xf32>
    %cst_13 = arith.constant dense<0.000000e+00> : vector<8x32xf32>
    %13 = tpu.matmul %10, %12, %cst_13 {dimension_numbers = #tpu.dot_dimension_numbers<[1], [0], [0], [1], [0, 0, 1, 1], [], []>} : vector<8x32xf32>, vector<32x32xf32>, vector<8x32xf32> -> vector<8x32xf32>
    %c0_14 = arith.constant 0 : index
    %c0_15 = arith.constant 0 : index
    %c0_16 = arith.constant 0 : index
    %c0_17 = arith.constant 0 : index
    %14 = vector.load %arg4[%c0_14, %c0_15, %c0_16, %c0_17] : memref<3x2x1x32xf32, #tpu.memory_space<vmem>>, vector<1x1x1x32xf32>
    %15 = vector.shape_cast %14 : vector<1x1x1x32xf32> to vector<1x32xf32>
    %16 = vector.broadcast %15 : vector<1x32xf32> to vector<8x32xf32>
    %17 = arith.addf %13, %16 : vector<8x32xf32>
    %cst_18 = arith.constant 0.000000e+00 : f32
    %18 = vector.broadcast %cst_18 : f32 to vector<8x32xf32>
    %19 = arith.maximumf %17, %18 : vector<8x32xf32>
    %c0_19 = arith.constant 0 : index
    %c1 = arith.constant 1 : index
    %c0_20 = arith.constant 0 : index
    %c0_21 = arith.constant 0 : index
    %20 = vector.load %arg3[%c0_19, %c1, %c0_20, %c0_21] : memref<3x2x32x32xf32, #tpu.memory_space<vmem>>, vector<1x1x32x32xf32>
    %21 = vector.shape_cast %20 : vector<1x1x32x32xf32> to vector<32x32xf32>
    %cst_22 = arith.constant dense<0.000000e+00> : vector<8x32xf32>
    %22 = tpu.matmul %19, %21, %cst_22 {dimension_numbers = #tpu.dot_dimension_numbers<[1], [0], [0], [1], [0, 0, 1, 1], [], []>} : vector<8x32xf32>, vector<32x32xf32>, vector<8x32xf32> -> vector<8x32xf32>
    %c0_23 = arith.constant 0 : index
    %c1_24 = arith.constant 1 : index
    %c0_25 = arith.constant 0 : index
    %c0_26 = arith.constant 0 : index
    %23 = vector.load %arg4[%c0_23, %c1_24, %c0_25, %c0_26] : memref<3x2x1x32xf32, #tpu.memory_space<vmem>>, vector<1x1x1x32xf32>
    %24 = vector.shape_cast %23 : vector<1x1x1x32xf32> to vector<1x32xf32>
    %25 = vector.broadcast %24 : vector<1x32xf32> to vector<8x32xf32>
    %26 = arith.addf %22, %25 : vector<8x32xf32>
    %cst_27 = arith.constant 0.000000e+00 : f32
    %27 = vector.broadcast %cst_27 : f32 to vector<8x32xf32>
    %28 = arith.maximumf %26, %27 : vector<8x32xf32>
    %c0_28 = arith.constant 0 : index
    %c0_29 = arith.constant 0 : index
    %c0_30 = arith.constant 0 : index
    %29 = vector.load %arg5[%c0_28, %c0_29, %c0_30] : memref<3x32x24xf32, #tpu.memory_space<vmem>>, vector<1x32x24xf32>
    %30 = vector.shape_cast %29 : vector<1x32x24xf32> to vector<32x24xf32>
    %cst_31 = arith.constant dense<0.000000e+00> : vector<8x24xf32>
    %31 = tpu.matmul %28, %30, %cst_31 {dimension_numbers = #tpu.dot_dimension_numbers<[1], [0], [0], [1], [0, 0, 1, 1], [], []>} : vector<8x32xf32>, vector<32x24xf32>, vector<8x24xf32> -> vector<8x24xf32>
    %c0_32 = arith.constant 0 : index
    %c0_33 = arith.constant 0 : index
    %c0_34 = arith.constant 0 : index
    %32 = vector.load %arg6[%c0_32, %c0_33, %c0_34] : memref<3x1x24xf32, #tpu.memory_space<vmem>>, vector<1x1x24xf32>
    %33 = vector.shape_cast %32 : vector<1x1x24xf32> to vector<1x24xf32>
    %34 = vector.broadcast %33 : vector<1x24xf32> to vector<8x24xf32>
    %35 = arith.addf %31, %34 : vector<8x24xf32>
    %36 = vector.extract_strided_slice %35 {offsets = [0, 0], sizes = [8, 16], strides = [1, 1]} : vector<8x24xf32> to vector<8x16xf32>
    %37 = arith.subf %0, %36 : vector<8x16xf32>
    %38 = vector.extract_strided_slice %35 {offsets = [0, 16], sizes = [8, 8], strides = [1, 1]} : vector<8x24xf32> to vector<8x8xf32>
    %39 = arith.addf %1, %38 : vector<8x8xf32>
    %c1_35 = arith.constant 1 : index
    %c0_36 = arith.constant 0 : index
    %c0_37 = arith.constant 0 : index
    %40 = vector.load %arg1[%c1_35, %c0_36, %c0_37] : memref<3x16x32xf32, #tpu.memory_space<vmem>>, vector<1x16x32xf32>
    %41 = vector.shape_cast %40 : vector<1x16x32xf32> to vector<16x32xf32>
    %cst_38 = arith.constant dense<0.000000e+00> : vector<8x32xf32>
    %42 = tpu.matmul %37, %41, %cst_38 {dimension_numbers = #tpu.dot_dimension_numbers<[1], [0], [0], [1], [0, 0, 1, 1], [], []>} : vector<8x16xf32>, vector<16x32xf32>, vector<8x32xf32> -> vector<8x32xf32>
    %c1_39 = arith.constant 1 : index
    %c0_40 = arith.constant 0 : index
    %c0_41 = arith.constant 0 : index
    %43 = vector.load %arg2[%c1_39, %c0_40, %c0_41] : memref<3x1x32xf32, #tpu.memory_space<vmem>>, vector<1x1x32xf32>
    %44 = vector.shape_cast %43 : vector<1x1x32xf32> to vector<1x32xf32>
    %45 = vector.broadcast %44 : vector<1x32xf32> to vector<8x32xf32>
    %46 = arith.addf %42, %45 : vector<8x32xf32>
    %cst_42 = arith.constant 0.000000e+00 : f32
    %47 = vector.broadcast %cst_42 : f32 to vector<8x32xf32>
    %48 = arith.maximumf %46, %47 : vector<8x32xf32>
    %c1_43 = arith.constant 1 : index
    %c0_44 = arith.constant 0 : index
    %c0_45 = arith.constant 0 : index
    %c0_46 = arith.constant 0 : index
    %49 = vector.load %arg3[%c1_43, %c0_44, %c0_45, %c0_46] : memref<3x2x32x32xf32, #tpu.memory_space<vmem>>, vector<1x1x32x32xf32>
    %50 = vector.shape_cast %49 : vector<1x1x32x32xf32> to vector<32x32xf32>
    %cst_47 = arith.constant dense<0.000000e+00> : vector<8x32xf32>
    %51 = tpu.matmul %48, %50, %cst_47 {dimension_numbers = #tpu.dot_dimension_numbers<[1], [0], [0], [1], [0, 0, 1, 1], [], []>} : vector<8x32xf32>, vector<32x32xf32>, vector<8x32xf32> -> vector<8x32xf32>
    %c1_48 = arith.constant 1 : index
    %c0_49 = arith.constant 0 : index
    %c0_50 = arith.constant 0 : index
    %c0_51 = arith.constant 0 : index
    %52 = vector.load %arg4[%c1_48, %c0_49, %c0_50, %c0_51] : memref<3x2x1x32xf32, #tpu.memory_space<vmem>>, vector<1x1x1x32xf32>
    %53 = vector.shape_cast %52 : vector<1x1x1x32xf32> to vector<1x32xf32>
    %54 = vector.broadcast %53 : vector<1x32xf32> to vector<8x32xf32>
    %55 = arith.addf %51, %54 : vector<8x32xf32>
    %cst_52 = arith.constant 0.000000e+00 : f32
    %56 = vector.broadcast %cst_52 : f32 to vector<8x32xf32>
    %57 = arith.maximumf %55, %56 : vector<8x32xf32>
    %c1_53 = arith.constant 1 : index
    %c1_54 = arith.constant 1 : index
    %c0_55 = arith.constant 0 : index
    %c0_56 = arith.constant 0 : index
    %58 = vector.load %arg3[%c1_53, %c1_54, %c0_55, %c0_56] : memref<3x2x32x32xf32, #tpu.memory_space<vmem>>, vector<1x1x32x32xf32>
    %59 = vector.shape_cast %58 : vector<1x1x32x32xf32> to vector<32x32xf32>
    %cst_57 = arith.constant dense<0.000000e+00> : vector<8x32xf32>
    %60 = tpu.matmul %57, %59, %cst_57 {dimension_numbers = #tpu.dot_dimension_numbers<[1], [0], [0], [1], [0, 0, 1, 1], [], []>} : vector<8x32xf32>, vector<32x32xf32>, vector<8x32xf32> -> vector<8x32xf32>
    %c1_58 = arith.constant 1 : index
    %c1_59 = arith.constant 1 : index
    %c0_60 = arith.constant 0 : index
    %c0_61 = arith.constant 0 : index
    %61 = vector.load %arg4[%c1_58, %c1_59, %c0_60, %c0_61] : memref<3x2x1x32xf32, #tpu.memory_space<vmem>>, vector<1x1x1x32xf32>
    %62 = vector.shape_cast %61 : vector<1x1x1x32xf32> to vector<1x32xf32>
    %63 = vector.broadcast %62 : vector<1x32xf32> to vector<8x32xf32>
    %64 = arith.addf %60, %63 : vector<8x32xf32>
    %cst_62 = arith.constant 0.000000e+00 : f32
    %65 = vector.broadcast %cst_62 : f32 to vector<8x32xf32>
    %66 = arith.maximumf %64, %65 : vector<8x32xf32>
    %c1_63 = arith.constant 1 : index
    %c0_64 = arith.constant 0 : index
    %c0_65 = arith.constant 0 : index
    %67 = vector.load %arg5[%c1_63, %c0_64, %c0_65] : memref<3x32x24xf32, #tpu.memory_space<vmem>>, vector<1x32x24xf32>
    %68 = vector.shape_cast %67 : vector<1x32x24xf32> to vector<32x24xf32>
    %cst_66 = arith.constant dense<0.000000e+00> : vector<8x24xf32>
    %69 = tpu.matmul %66, %68, %cst_66 {dimension_numbers = #tpu.dot_dimension_numbers<[1], [0], [0], [1], [0, 0, 1, 1], [], []>} : vector<8x32xf32>, vector<32x24xf32>, vector<8x24xf32> -> vector<8x24xf32>
    %c1_67 = arith.constant 1 : index
    %c0_68 = arith.constant 0 : index
    %c0_69 = arith.constant 0 : index
    %70 = vector.load %arg6[%c1_67, %c0_68, %c0_69] : memref<3x1x24xf32, #tpu.memory_space<vmem>>, vector<1x1x24xf32>
    %71 = vector.shape_cast %70 : vector<1x1x24xf32> to vector<1x24xf32>
    %72 = vector.broadcast %71 : vector<1x24xf32> to vector<8x24xf32>
    %73 = arith.addf %69, %72 : vector<8x24xf32>
    %74 = vector.extract_strided_slice %73 {offsets = [0, 0], sizes = [8, 16], strides = [1, 1]} : vector<8x24xf32> to vector<8x16xf32>
    %75 = arith.subf %37, %74 : vector<8x16xf32>
    %76 = vector.extract_strided_slice %73 {offsets = [0, 16], sizes = [8, 8], strides = [1, 1]} : vector<8x24xf32> to vector<8x8xf32>
    %77 = arith.addf %39, %76 : vector<8x8xf32>
    %c2 = arith.constant 2 : index
    %c0_70 = arith.constant 0 : index
    %c0_71 = arith.constant 0 : index
    %78 = vector.load %arg1[%c2, %c0_70, %c0_71] : memref<3x16x32xf32, #tpu.memory_space<vmem>>, vector<1x16x32xf32>
    %79 = vector.shape_cast %78 : vector<1x16x32xf32> to vector<16x32xf32>
    %cst_72 = arith.constant dense<0.000000e+00> : vector<8x32xf32>
    %80 = tpu.matmul %75, %79, %cst_72 {dimension_numbers = #tpu.dot_dimension_numbers<[1], [0], [0], [1], [0, 0, 1, 1], [], []>} : vector<8x16xf32>, vector<16x32xf32>, vector<8x32xf32> -> vector<8x32xf32>
    %c2_73 = arith.constant 2 : index
    %c0_74 = arith.constant 0 : index
    %c0_75 = arith.constant 0 : index
    %81 = vector.load %arg2[%c2_73, %c0_74, %c0_75] : memref<3x1x32xf32, #tpu.memory_space<vmem>>, vector<1x1x32xf32>
    %82 = vector.shape_cast %81 : vector<1x1x32xf32> to vector<1x32xf32>
    %83 = vector.broadcast %82 : vector<1x32xf32> to vector<8x32xf32>
    %84 = arith.addf %80, %83 : vector<8x32xf32>
    %cst_76 = arith.constant 0.000000e+00 : f32
    %85 = vector.broadcast %cst_76 : f32 to vector<8x32xf32>
    %86 = arith.maximumf %84, %85 : vector<8x32xf32>
    %c2_77 = arith.constant 2 : index
    %c0_78 = arith.constant 0 : index
    %c0_79 = arith.constant 0 : index
    %c0_80 = arith.constant 0 : index
    %87 = vector.load %arg3[%c2_77, %c0_78, %c0_79, %c0_80] : memref<3x2x32x32xf32, #tpu.memory_space<vmem>>, vector<1x1x32x32xf32>
    %88 = vector.shape_cast %87 : vector<1x1x32x32xf32> to vector<32x32xf32>
    %cst_81 = arith.constant dense<0.000000e+00> : vector<8x32xf32>
    %89 = tpu.matmul %86, %88, %cst_81 {dimension_numbers = #tpu.dot_dimension_numbers<[1], [0], [0], [1], [0, 0, 1, 1], [], []>} : vector<8x32xf32>, vector<32x32xf32>, vector<8x32xf32> -> vector<8x32xf32>
    %c2_82 = arith.constant 2 : index
    %c0_83 = arith.constant 0 : index
    %c0_84 = arith.constant 0 : index
    %c0_85 = arith.constant 0 : index
    %90 = vector.load %arg4[%c2_82, %c0_83, %c0_84, %c0_85] : memref<3x2x1x32xf32, #tpu.memory_space<vmem>>, vector<1x1x1x32xf32>
    %91 = vector.shape_cast %90 : vector<1x1x1x32xf32> to vector<1x32xf32>
    %92 = vector.broadcast %91 : vector<1x32xf32> to vector<8x32xf32>
    %93 = arith.addf %89, %92 : vector<8x32xf32>
    %cst_86 = arith.constant 0.000000e+00 : f32
    %94 = vector.broadcast %cst_86 : f32 to vector<8x32xf32>
    %95 = arith.maximumf %93, %94 : vector<8x32xf32>
    %c2_87 = arith.constant 2 : index
    %c1_88 = arith.constant 1 : index
    %c0_89 = arith.constant 0 : index
    %c0_90 = arith.constant 0 : index
    %96 = vector.load %arg3[%c2_87, %c1_88, %c0_89, %c0_90] : memref<3x2x32x32xf32, #tpu.memory_space<vmem>>, vector<1x1x32x32xf32>
    %97 = vector.shape_cast %96 : vector<1x1x32x32xf32> to vector<32x32xf32>
    %cst_91 = arith.constant dense<0.000000e+00> : vector<8x32xf32>
    %98 = tpu.matmul %95, %97, %cst_91 {dimension_numbers = #tpu.dot_dimension_numbers<[1], [0], [0], [1], [0, 0, 1, 1], [], []>} : vector<8x32xf32>, vector<32x32xf32>, vector<8x32xf32> -> vector<8x32xf32>
    %c2_92 = arith.constant 2 : index
    %c1_93 = arith.constant 1 : index
    %c0_94 = arith.constant 0 : index
    %c0_95 = arith.constant 0 : index
    %99 = vector.load %arg4[%c2_92, %c1_93, %c0_94, %c0_95] : memref<3x2x1x32xf32, #tpu.memory_space<vmem>>, vector<1x1x1x32xf32>
    %100 = vector.shape_cast %99 : vector<1x1x1x32xf32> to vector<1x32xf32>
    %101 = vector.broadcast %100 : vector<1x32xf32> to vector<8x32xf32>
    %102 = arith.addf %98, %101 : vector<8x32xf32>
    %cst_96 = arith.constant 0.000000e+00 : f32
    %103 = vector.broadcast %cst_96 : f32 to vector<8x32xf32>
    %104 = arith.maximumf %102, %103 : vector<8x32xf32>
    %c2_97 = arith.constant 2 : index
    %c0_98 = arith.constant 0 : index
    %c0_99 = arith.constant 0 : index
    %105 = vector.load %arg5[%c2_97, %c0_98, %c0_99] : memref<3x32x24xf32, #tpu.memory_space<vmem>>, vector<1x32x24xf32>
    %106 = vector.shape_cast %105 : vector<1x32x24xf32> to vector<32x24xf32>
    %cst_100 = arith.constant dense<0.000000e+00> : vector<8x24xf32>
    %107 = tpu.matmul %104, %106, %cst_100 {dimension_numbers = #tpu.dot_dimension_numbers<[1], [0], [0], [1], [0, 0, 1, 1], [], []>} : vector<8x32xf32>, vector<32x24xf32>, vector<8x24xf32> -> vector<8x24xf32>
    %c2_101 = arith.constant 2 : index
    %c0_102 = arith.constant 0 : index
    %c0_103 = arith.constant 0 : index
    %108 = vector.load %arg6[%c2_101, %c0_102, %c0_103] : memref<3x1x24xf32, #tpu.memory_space<vmem>>, vector<1x1x24xf32>
    %109 = vector.shape_cast %108 : vector<1x1x24xf32> to vector<1x24xf32>
    %110 = vector.broadcast %109 : vector<1x24xf32> to vector<8x24xf32>
    %111 = arith.addf %107, %110 : vector<8x24xf32>
    %112 = vector.extract_strided_slice %111 {offsets = [0, 0], sizes = [8, 16], strides = [1, 1]} : vector<8x24xf32> to vector<8x16xf32>
    %113 = arith.subf %75, %112 : vector<8x16xf32>
    %114 = vector.extract_strided_slice %111 {offsets = [0, 16], sizes = [8, 8], strides = [1, 1]} : vector<8x24xf32> to vector<8x8xf32>
    %115 = arith.addf %77, %114 : vector<8x8xf32>
    %c0_104 = arith.constant 0 : index
    %c0_105 = arith.constant 0 : index
    %116 = vector.load %arg7[%c0_104, %c0_105] : memref<8x16xf32, #tpu.memory_space<vmem>>, vector<8x16xf32>
    tpu.vector_store %arg7[%c0_104, %c0_105], %113 {strides = array<i32>} : memref<8x16xf32, #tpu.memory_space<vmem>>, vector<8x16xf32>,
    %c0_106 = arith.constant 0 : index
    %c0_107 = arith.constant 0 : index
    %117 = vector.load %arg8[%c0_106, %c0_107] : memref<8x8xf32, #tpu.memory_space<vmem>>, vector<8x8xf32>
    tpu.vector_store %arg8[%c0_106, %c0_107], %115 {strides = array<i32>} : memref<8x8xf32, #tpu.memory_space<vmem>>, vector<8x8xf32>,
    return
  }
}

</mosaic_0001>

<llo_original>
// kernel: tpu_custom_call.1
$region0: #{tpu_custom_call.1}
  #allocation0 [shape = 'u32[]', space=smem, size = 0x4, offset = 0x4, fixed_abs, tag = 'smem constant byte address 0x4 - core index']
  #allocation1 [shape = 'u32[72,128]{1,0:T(1,128)}', space=vmem, size = 0x9000, scoped, tag = 'internal scratch']
  %s0 = inlined_call_operand.vmem [shape: f32[8,16], index: 0, kind: input, shape index: {}]
  %s1 = inlined_call_operand.vmem [shape: f32[3,16,32], index: 1, kind: input, shape index: {}]
  %s2 = inlined_call_operand.vmem [shape: f32[3,1,32], index: 2, kind: input, shape index: {}]
  %s3 = inlined_call_operand.hbm [shape: f32[3,2,32,32], index: 3, kind: input, shape index: {}]
  %s4 = inlined_call_operand.vmem [shape: f32[3,2,1,32], index: 4, kind: input, shape index: {}]
  %s5 = inlined_call_operand.vmem [shape: f32[3,32,24], index: 5, kind: input, shape index: {}]
  %s6 = inlined_call_operand.vmem [shape: f32[3,1,24], index: 6, kind: input, shape index: {}]
  %s7 = inlined_call_operand.hbm [shape: f32[8,16], index: 7, kind: output, shape index: {0}]
  %s8 = inlined_call_operand.hbm [shape: f32[8,8], index: 8, kind: output, shape index: {1}]
  %9 = xla_tuple %s7, %s8
  %s10 = sld [smem:[#allocation0]]
  $region50: #{tpu_custom_call.1} parent=0
    _
  %s12 = ssub.s32 1, %s10
  %s13 = scalar_select 0, %s12, %s10
  $region1: #{tpu_custom_call.1} parent=0
    #allocation2 [shape = 'u8[98304]{0}', space=vmem, size = 0x18000, scoped, tag = 'input window, operand 3, single buffered']
    #allocation3 [shape = 's32[1]{0}', space=sflag, size = 0x4, scoped, tag = 'scoped memory for tpu_custom_call.1']
    #allocation4 [shape = 's32[1]{0}', space=sflag, size = 0x4, scoped, tag = 'scoped memory for tpu_custom_call.1']
    #allocation5 [shape = 'u8[4096]{0}', space=vmem, size = 0x1000, scoped, tag = 'output window, operand 0, single buffered']
    #allocation6 [shape = 'u8[4096]{0}', space=vmem, size = 0x1000, scoped, tag = 'output window, operand 1, single buffered']
    #allocation7 [shape = 's32[1]{0}', space=sflag, size = 0x4, scoped, tag = 'scoped memory for tpu_custom_call.1']
    %14 = vsyncpa [#allocation3], 0
    %15 = vsyncpa [#allocation4], 0
    %16 = vsyncpa [#allocation7], 0
    // Predicated region
    $region2: #{tpu_custom_call.1} parent=1 // pred_check
      _
    $region3: #{tpu_custom_call.1} parent=1 // pred_check_branch
      %18 = sbr.rel (0) target = $region5
    $region4: #{tpu_custom_call.1} parent=1 // pred_region
      _
    $region5: #{tpu_custom_call.1} parent=1 // pred_fallthru
      _
    // Predicated region
    $region6: #{tpu_custom_call.1} parent=1 // pred_check
      _
    $region7: #{tpu_custom_call.1} parent=1 // pred_check_branch
      %20 = sbr.rel (0) target = $region9
    $region8: #{tpu_custom_call.1} parent=1 // pred_region
      _
    $region9: #{tpu_custom_call.1} parent=1 // pred_fallthru
      _
    // Predicated region
    $region10: #{tpu_custom_call.1} parent=1 // pred_check
      _
    $region11: #{tpu_custom_call.1} parent=1 // pred_check_branch
      %22 = sbr.rel (0) target = $region13
    $region12: #{tpu_custom_call.1} parent=1 // pred_region
      _
    $region13: #{tpu_custom_call.1} parent=1 // pred_fallthru
      _
    // Predicated region
    $region14: #{tpu_custom_call.1} parent=1 // pred_check
      _
    $region15: #{tpu_custom_call.1} parent=1 // pred_check_branch
      %24 = sbr.rel (0) target = $region17
    $region16: #{tpu_custom_call.1} parent=1 // pred_region
      %26 = vsyncadd [#allocation3], 0
      %s27 = sshll.u32 %s3, 4
      %s28 = int_to_ptr.hbm [resolvable:$true] %s27
      %s29 = sshll.u32 [#allocation2], 4
      %s30 = int_to_ptr.vmem [resolvable:$true] %s29
      %35 = dma.hbm_to_vmem [thread:$0]  %s28, 3072, %s30, [#allocation3], 128, 128, 8
    $region17: #{tpu_custom_call.1} parent=1 // pred_fallthru
      _
    // Predicated region
    $region18: #{tpu_custom_call.1} parent=1 // pred_check
      _
    $region19: #{tpu_custom_call.1} parent=1 // pred_check_branch
      %37 = sbr.rel (0) target = $region21
    $region20: #{tpu_custom_call.1} parent=1 // pred_region
      _
    $region21: #{tpu_custom_call.1} parent=1 // pred_fallthru
      _
    // Predicated region
    $region22: #{tpu_custom_call.1} parent=1 // pred_check
      _
    $region23: #{tpu_custom_call.1} parent=1 // pred_check_branch
      %39 = sbr.rel (0) target = $region25
    $region24: #{tpu_custom_call.1} parent=1 // pred_region
      _
    $region25: #{tpu_custom_call.1} parent=1 // pred_fallthru
      _
    // Predicated region
    $region26: #{tpu_custom_call.1} parent=1 // pred_check
      _
    $region27: #{tpu_custom_call.1} parent=1 // pred_check_branch
      %41 = sbr.rel (0) target = $region29
    $region28: #{tpu_custom_call.1} parent=1 // pred_region
      _
    $region29: #{tpu_custom_call.1} parent=1 // pred_fallthru
      _
    // Predicated region
    $region30: #{tpu_custom_call.1} parent=1 // pred_check
      _
    $region31: #{tpu_custom_call.1} parent=1 // pred_check_branch
      %43 = sbr.rel (0) target = $region33
    $region32: #{tpu_custom_call.1} parent=1 // pred_region
      %45 = dma.done [#allocation3], 3072
    $region33: #{tpu_custom_call.1} parent=1 // pred_fallthru
      _
    %v46 = vld [vmem:[%s0] sm:$0xff]
    %v47 = vld [vmem:[%s1] sm:$0xff]
    %v48 = vld [vmem:[%s1 + $0x8] sm:$0xff]
    %v49 = vld [vmem:[%s2] sm:$0x1]
    %v51 = vperm.slane %v49, 0
    %vm53 = vcmask 130048
    %v55 = vsel %vm53, %v46, 0
    %57 = vmatpush.msra.mxu0 0.0
    %58 = vmatpush.msra.mxu0 0.0
    %59 = vmatpush.msra.mxu0 0.0
    %60 = vmatpush.msra.mxu0 0.0
    %61 = vmatpush.msra.mxu0 0.0
    %62 = vmatpush.msra.mxu0 0.0
    %63 = vmatpush.msra.mxu0 0.0
    %64 = vmatpush.msra.mxu0 0.0
    %65 = vmatpush.msra.mxu0 0.0
    %66 = vmatpush.msra.mxu0 0.0
    %67 = vmatpush.msra.mxu0 0.0
    %68 = vmatpush.msra.mxu0 0.0
    %69 = vmatpush.msra.mxu0 0.0
    %70 = vmatpush.msra.mxu0 0.0
    %71 = vmatpush.msra.mxu0 %v48
    %72 = vmatpush.msra.mxu0 %v47
    %73 = vmatmul.f32.gmra.mxu0 %v55
    %v74 = vpop.f32.mrf.mxu0
    %v75 = vadd.f32 %v51, %v74
    %76 = vdwg.mxu0
    %v77 = vmax.f32 %v75, 0.0
    %v78 = vld [vmem:[#allocation2] sm:$0xff]
    %v79 = vld [vmem:[#allocation2 + $0x8] sm:$0xff]
    %v80 = vld [vmem:[#allocation2 + $0x10] sm:$0xff]
    %v81 = vld [vmem:[#allocation2 + $0x18] sm:$0xff]
    %v82 = vld [vmem:[%s4] sm:$0x1]
    %v84 = vperm.slane %v82, 0
    %vm86 = vcmask 261120
    %v88 = vsel %vm86, %v77, 0
    %90 = vmatpush.msra.mxu0 0.0
    %91 = vmatpush.msra.mxu0 0.0
    %92 = vmatpush.msra.mxu0 0.0
    %93 = vmatpush.msra.mxu0 0.0
    %94 = vmatpush.msra.mxu0 0.0
    %95 = vmatpush.msra.mxu0 0.0
    %96 = vmatpush.msra.mxu0 0.0
    %97 = vmatpush.msra.mxu0 0.0
    %98 = vmatpush.msra.mxu0 0.0
    %99 = vmatpush.msra.mxu0 0.0
    %100 = vmatpush.msra.mxu0 0.0
    %101 = vmatpush.msra.mxu0 0.0
    %102 = vmatpush.msra.mxu0 %v81
    %103 = vmatpush.msra.mxu0 %v80
    %104 = vmatpush.msra.mxu0 %v79
    %105 = vmatpush.msra.mxu0 %v78
    %106 = vmatmul.f32.gmra.mxu0 %v88
    %v107 = vpop.f32.mrf.mxu0
    %v108 = vadd.f32 %v84, %v107
    %109 = vdwg.mxu0
    %v110 = vmax.f32 %v108, 0.0
    %s111 = scalar_lea.vmem [#allocation2], 32
    %v112 = vld [vmem:[%s111] sm:$0xff]
    %v113 = vld [vmem:[%s111 + $0x8] sm:$0xff]
    %v114 = vld [vmem:[%s111 + $0x10] sm:$0xff]
    %v115 = vld [vmem:[%s111 + $0x18] sm:$0xff]
    %s116 = scalar_lea.vmem %s4, 1
    %v117 = vld [vmem:[%s116] sm:$0x1]
    %v119 = vperm.slane %v117, 0
    %v122 = vsel %vm86, %v110, 0
    %124 = vmatpush.msra.mxu0 0.0
    %125 = vmatpush.msra.mxu0 0.0
    %126 = vmatpush.msra.mxu0 0.0
    %127 = vmatpush.msra.mxu0 0.0
    %128 = vmatpush.msra.mxu0 0.0
    %129 = vmatpush.msra.mxu0 0.0
    %130 = vmatpush.msra.mxu0 0.0
    %131 = vmatpush.msra.mxu0 0.0
    %132 = vmatpush.msra.mxu0 0.0
    %133 = vmatpush.msra.mxu0 0.0
    %134 = vmatpush.msra.mxu0 0.0
    %135 = vmatpush.msra.mxu0 0.0
    %136 = vmatpush.msra.mxu0 %v115
    %137 = vmatpush.msra.mxu0 %v114
    %138 = vmatpush.msra.mxu0 %v113
    %139 = vmatpush.msra.mxu0 %v112
    %140 = vmatmul.f32.gmra.mxu0 %v122
    %v141 = vpop.f32.mrf.mxu0
    %v142 = vadd.f32 %v119, %v141
    %143 = vdwg.mxu0
    %v144 = vmax.f32 %v142, 0.0
    %v145 = vld [vmem:[%s5] sm:$0xff]
    %v146 = vld [vmem:[%s5 + $0x8] sm:$0xff]
    %v147 = vld [vmem:[%s5 + $0x10] sm:$0xff]
    %v148 = vld [vmem:[%s5 + $0x18] sm:$0xff]
    %v149 = vld [vmem:[%s6] sm:$0x1]
    %v151 = vperm.slane %v149, 0
    %v154 = vsel %vm86, %v144, 0
    %156 = vmatpush.msra.mxu0 0.0
    %157 = vmatpush.msra.mxu0 0.0
    %158 = vmatpush.msra.mxu0 0.0
    %159 = vmatpush.msra.mxu0 0.0
    %160 = vmatpush.msra.mxu0 0.0
    %161 = vmatpush.msra.mxu0 0.0
    %162 = vmatpush.msra.mxu0 0.0
    %163 = vmatpush.msra.mxu0 0.0
    %164 = vmatpush.msra.mxu0 0.0
    %165 = vmatpush.msra.mxu0 0.0
    %166 = vmatpush.msra.mxu0 0.0
    %167 = vmatpush.msra.mxu0 0.0
    %168 = vmatpush.msra.mxu0 %v148
    %169 = vmatpush.msra.mxu0 %v147
    %170 = vmatpush.msra.mxu0 %v146
    %171 = vmatpush.msra.mxu0 %v145
    %172 = vmatmul.f32.gmra.mxu0 %v154
    %v173 = vpop.f32.mrf.mxu0
    %v174 = vadd.f32 %v151, %v173
    %175 = vdwg.mxu0
    %v176 = vsub.f32 %v46, %v174
    %v177 = vadd.f32 %v174, 0.0
    %s178 = scalar_lea.vmem %s1, 16
    %v179 = vld [vmem:[%s178] sm:$0xff]
    %v180 = vld [vmem:[%s178 + $0x8] sm:$0xff]
    %s181 = scalar_lea.vmem %s2, 1
    %v182 = vld [vmem:[%s181] sm:$0x1]
    %v184 = vperm.slane %v182, 0
    %v187 = vsel %vm53, %v176, 0
    %189 = vmatpush.msra.mxu0 0.0
    %190 = vmatpush.msra.mxu0 0.0
    %191 = vmatpush.msra.mxu0 0.0
    %192 = vmatpush.msra.mxu0 0.0
    %193 = vmatpush.msra.mxu0 0.0
    %194 = vmatpush.msra.mxu0 0.0
    %195 = vmatpush.msra.mxu0 0.0
    %196 = vmatpush.msra.mxu0 0.0
    %197 = vmatpush.msra.mxu0 0.0
    %198 = vmatpush.msra.mxu0 0.0
    %199 = vmatpush.msra.mxu0 0.0
    %200 = vmatpush.msra.mxu0 0.0
    %201 = vmatpush.msra.mxu0 0.0
    %202 = vmatpush.msra.mxu0 0.0
    %203 = vmatpush.msra.mxu0 %v180
    %204 = vmatpush.msra.mxu0 %v179
    %205 = vmatmul.f32.gmra.mxu0 %v187
    %v206 = vpop.f32.mrf.mxu0
    %v207 = vadd.f32 %v184, %v206
    %208 = vdwg.mxu0
    %v209 = vmax.f32 %v207, 0.0
    %s210 = scalar_lea.vmem [#allocation2], 64
    %v211 = vld [vmem:[%s210] sm:$0xff]
    %v212 = vld [vmem:[%s210 + $0x8] sm:$0xff]
    %v213 = vld [vmem:[%s210 + $0x10] sm:$0xff]
    %v214 = vld [vmem:[%s210 + $0x18] sm:$0xff]
    %s215 = scalar_lea.vmem %s4, 2
    %v216 = vld [vmem:[%s215] sm:$0x1]
    %v218 = vperm.slane %v216, 0
    %v221 = vsel %vm86, %v209, 0
    %223 = vmatpush.msra.mxu0 0.0
    %224 = vmatpush.msra.mxu0 0.0
    %225 = vmatpush.msra.mxu0 0.0
    %226 = vmatpush.msra.mxu0 0.0
    %227 = vmatpush.msra.mxu0 0.0
    %228 = vmatpush.msra.mxu0 0.0
    %229 = vmatpush.msra.mxu0 0.0
    %230 = vmatpush.msra.mxu0 0.0
    %231 = vmatpush.msra.mxu0 0.0
    %232 = vmatpush.msra.mxu0 0.0
    %233 = vmatpush.msra.mxu0 0.0
    %234 = vmatpush.msra.mxu0 0.0
    %235 = vmatpush.msra.mxu0 %v214
    %236 = vmatpush.msra.mxu0 %v213
    %237 = vmatpush.msra.mxu0 %v212
    %238 = vmatpush.msra.mxu0 %v211
    %239 = vmatmul.f32.gmra.mxu0 %v221
    %v240 = vpop.f32.mrf.mxu0
    %v241 = vadd.f32 %v218, %v240
    %242 = vdwg.mxu0
    %v243 = vmax.f32 %v241, 0.0
    %s244 = scalar_lea.vmem [#allocation2], 96
    %v245 = vld [vmem:[%s244] sm:$0xff]
    %v246 = vld [vmem:[%s244 + $0x8] sm:$0xff]
    %v247 = vld [vmem:[%s244 + $0x10] sm:$0xff]
    %v248 = vld [vmem:[%s244 + $0x18] sm:$0xff]
    %s249 = scalar_lea.vmem %s4, 3
    %v250 = vld [vmem:[%s249] sm:$0x1]
    %v252 = vperm.slane %v250, 0
    %v255 = vsel %vm86, %v243, 0
    %257 = vmatpush.msra.mxu0 0.0
    %258 = vmatpush.msra.mxu0 0.0
    %259 = vmatpush.msra.mxu0 0.0
    %260 = vmatpush.msra.mxu0 0.0
    %261 = vmatpush.msra.mxu0 0.0
    %262 = vmatpush.msra.mxu0 0.0
    %263 = vmatpush.msra.mxu0 0.0
    %264 = vmatpush.msra.mxu0 0.0
    %265 = vmatpush.msra.mxu0 0.0
    %266 = vmatpush.msra.mxu0 0.0
    %267 = vmatpush.msra.mxu0 0.0
    %268 = vmatpush.msra.mxu0 0.0
    %269 = vmatpush.msra.mxu0 %v248
    %270 = vmatpush.msra.mxu0 %v247
    %271 = vmatpush.msra.mxu0 %v246
    %272 = vmatpush.msra.mxu0 %v245
    %273 = vmatmul.f32.gmra.mxu0 %v255
    %v274 = vpop.f32.mrf.mxu0
    %v275 = vadd.f32 %v252, %v274
    %276 = vdwg.mxu0
    %v277 = vmax.f32 %v275, 0.0
    %s278 = scalar_lea.vmem %s5, 32
    %v279 = vld [vmem:[%s278] sm:$0xff]
    %v280 = vld [vmem:[%s278 + $0x8] sm:$0xff]
    %v281 = vld [vmem:[%s278 + $0x10] sm:$0xff]
    %v282 = vld [vmem:[%s278 + $0x18] sm:$0xff]
    %s283 = scalar_lea.vmem %s6, 1
    %v284 = vld [vmem:[%s283] sm:$0x1]
    %v286 = vperm.slane %v284, 0
    %v289 = vsel %vm86, %v277, 0
    %291 = vmatpush.msra.mxu0 0.0
    %292 = vmatpush.msra.mxu0 0.0
    %293 = vmatpush.msra.mxu0 0.0
    %294 = vmatpush.msra.mxu0 0.0
    %295 = vmatpush.msra.mxu0 0.0
    %296 = vmatpush.msra.mxu0 0.0
    %297 = vmatpush.msra.mxu0 0.0
    %298 = vmatpush.msra.mxu0 0.0
    %299 = vmatpush.msra.mxu0 0.0
    %300 = vmatpush.msra.mxu0 0.0
    %301 = vmatpush.msra.mxu0 0.0
    %302 = vmatpush.msra.mxu0 0.0
    %303 = vmatpush.msra.mxu0 %v282
    %304 = vmatpush.msra.mxu0 %v281
    %305 = vmatpush.msra.mxu0 %v280
    %306 = vmatpush.msra.mxu0 %v279
    %307 = vmatmul.f32.gmra.mxu0 %v289
    %v308 = vpop.f32.mrf.mxu0
    %v309 = vadd.f32 %v286, %v308
    %310 = vdwg.mxu0
    %v311 = vsub.f32 %v176, %v309
    %v312 = vadd.f32 %v177, %v309
    %s313 = scalar_lea.vmem %s1, 32
    %v314 = vld [vmem:[%s313] sm:$0xff]
    %v315 = vld [vmem:[%s313 + $0x8] sm:$0xff]
    %s316 = scalar_lea.vmem %s2, 2
    %v317 = vld [vmem:[%s316] sm:$0x1]
    %v319 = vperm.slane %v317, 0
    %v322 = vsel %vm53, %v311, 0
    %324 = vmatpush.msra.mxu0 0.0
    %325 = vmatpush.msra.mxu0 0.0
    %326 = vmatpush.msra.mxu0 0.0
    %327 = vmatpush.msra.mxu0 0.0
    %328 = vmatpush.msra.mxu0 0.0
    %329 = vmatpush.msra.mxu0 0.0
    %330 = vmatpush.msra.mxu0 0.0
    %331 = vmatpush.msra.mxu0 0.0
    %332 = vmatpush.msra.mxu0 0.0
    %333 = vmatpush.msra.mxu0 0.0
    %334 = vmatpush.msra.mxu0 0.0
    %335 = vmatpush.msra.mxu0 0.0
    %336 = vmatpush.msra.mxu0 0.0
    %337 = vmatpush.msra.mxu0 0.0
    %338 = vmatpush.msra.mxu0 %v315
    %339 = vmatpush.msra.mxu0 %v314
    %340 = vmatmul.f32.gmra.mxu0 %v322
    %v341 = vpop.f32.mrf.mxu0
    %v342 = vadd.f32 %v319, %v341
    %343 = vdwg.mxu0
    %v344 = vmax.f32 %v342, 0.0
    %s345 = scalar_lea.vmem [#allocation2], 128
    %v346 = vld [vmem:[%s345] sm:$0xff]
    %v347 = vld [vmem:[%s345 + $0x8] sm:$0xff]
    %v348 = vld [vmem:[%s345 + $0x10] sm:$0xff]
    %v349 = vld [vmem:[%s345 + $0x18] sm:$0xff]
    %s350 = scalar_lea.vmem %s4, 4
    %v351 = vld [vmem:[%s350] sm:$0x1]
    %v353 = vperm.slane %v351, 0
    %v356 = vsel %vm86, %v344, 0
    %358 = vmatpush.msra.mxu0 0.0
    %359 = vmatpush.msra.mxu0 0.0
    %360 = vmatpush.msra.mxu0 0.0
    %361 = vmatpush.msra.mxu0 0.0
    %362 = vmatpush.msra.mxu0 0.0
    %363 = vmatpush.msra.mxu0 0.0
    %364 = vmatpush.msra.mxu0 0.0
    %365 = vmatpush.msra.mxu0 0.0
    %366 = vmatpush.msra.mxu0 0.0
    %367 = vmatpush.msra.mxu0 0.0
    %368 = vmatpush.msra.mxu0 0.0
    %369 = vmatpush.msra.mxu0 0.0
    %370 = vmatpush.msra.mxu0 %v349
    %371 = vmatpush.msra.mxu0 %v348
    %372 = vmatpush.msra.mxu0 %v347
    %373 = vmatpush.msra.mxu0 %v346
    %374 = vmatmul.f32.gmra.mxu0 %v356
    %v375 = vpop.f32.mrf.mxu0
    %v376 = vadd.f32 %v353, %v375
    %377 = vdwg.mxu0
    %v378 = vmax.f32 %v376, 0.0
    %s379 = scalar_lea.vmem [#allocation2], 160
    %v380 = vld [vmem:[%s379] sm:$0xff]
    %v381 = vld [vmem:[%s379 + $0x8] sm:$0xff]
    %v382 = vld [vmem:[%s379 + $0x10] sm:$0xff]
    %v383 = vld [vmem:[%s379 + $0x18] sm:$0xff]
    %s384 = scalar_lea.vmem %s4, 5
    %v385 = vld [vmem:[%s384] sm:$0x1]
    %v387 = vperm.slane %v385, 0
    %v390 = vsel %vm86, %v378, 0
    %392 = vmatpush.msra.mxu0 0.0
    %393 = vmatpush.msra.mxu0 0.0
    %394 = vmatpush.msra.mxu0 0.0
    %395 = vmatpush.msra.mxu0 0.0
    %396 = vmatpush.msra.mxu0 0.0
    %397 = vmatpush.msra.mxu0 0.0
    %398 = vmatpush.msra.mxu0 0.0
    %399 = vmatpush.msra.mxu0 0.0
    %400 = vmatpush.msra.mxu0 0.0
    %401 = vmatpush.msra.mxu0 0.0
    %402 = vmatpush.msra.mxu0 0.0
    %403 = vmatpush.msra.mxu0 0.0
    %404 = vmatpush.msra.mxu0 %v383
    %405 = vmatpush.msra.mxu0 %v382
    %406 = vmatpush.msra.mxu0 %v381
    %407 = vmatpush.msra.mxu0 %v380
    %408 = vmatmul.f32.gmra.mxu0 %v390
    %v409 = vpop.f32.mrf.mxu0
    %v410 = vadd.f32 %v387, %v409
    %411 = vdwg.mxu0
    %v412 = vmax.f32 %v410, 0.0
    %s413 = scalar_lea.vmem %s5, 64
    %v414 = vld [vmem:[%s413] sm:$0xff]
    %v415 = vld [vmem:[%s413 + $0x8] sm:$0xff]
    %v416 = vld [vmem:[%s413 + $0x10] sm:$0xff]
    %v417 = vld [vmem:[%s413 + $0x18] sm:$0xff]
    %s418 = scalar_lea.vmem %s6, 2
    %v419 = vld [vmem:[%s418] sm:$0x1]
    %v421 = vperm.slane %v419, 0
    %v424 = vsel %vm86, %v412, 0
    %426 = vmatpush.msra.mxu0 0.0
    %427 = vmatpush.msra.mxu0 0.0
    %428 = vmatpush.msra.mxu0 0.0
    %429 = vmatpush.msra.mxu0 0.0
    %430 = vmatpush.msra.mxu0 0.0
    %431 = vmatpush.msra.mxu0 0.0
    %432 = vmatpush.msra.mxu0 0.0
    %433 = vmatpush.msra.mxu0 0.0
    %434 = vmatpush.msra.mxu0 0.0
    %435 = vmatpush.msra.mxu0 0.0
    %436 = vmatpush.msra.mxu0 0.0
    %437 = vmatpush.msra.mxu0 0.0
    %438 = vmatpush.msra.mxu0 %v417
    %439 = vmatpush.msra.mxu0 %v416
    %440 = vmatpush.msra.mxu0 %v415
    %441 = vmatpush.msra.mxu0 %v414
    %442 = vmatmul.f32.gmra.mxu0 %v424
    %v443 = vpop.f32.mrf.mxu0
    %v444 = vadd.f32 %v421, %v443
    %445 = vdwg.mxu0
    %v446 = vsub.f32 %v311, %v444
    %v447 = vadd.f32 %v312, %v444
    %448 = vst.msk [vmem:[#allocation5] sm:$0xff] %vm53, %v446
    %450 = vrot.lane.b32.xlu0 %v447, 112
    %v451 = vpop.permute.xlu0 %450
    %vm453 = vcmask 64512
    %454 = vst.msk [vmem:[#allocation6] sm:$0xff] %vm453, %v451
    // Predicated region
    $region34: #{tpu_custom_call.1} parent=1 // pred_check
      _
    $region35: #{tpu_custom_call.1} parent=1 // pred_check_branch
      %456 = sbr.rel (0) target = $region37
    $region36: #{tpu_custom_call.1} parent=1 // pred_region
      %458 = vsyncadd [#allocation4], 0
      %s460 = sshll.u32 [#allocation5], 4
      %s461 = int_to_ptr.vmem [resolvable:$true] %s460
      %s462 = sshll.u32 %s7, 4
      %s463 = int_to_ptr.hbm [resolvable:$true] %s462
      %465 = dma.vmem_to_hbm [thread:$0]  %s461, 128, %s463, [#allocation4]
    $region37: #{tpu_custom_call.1} parent=1 // pred_fallthru
      _
    // Predicated region
    $region38: #{tpu_custom_call.1} parent=1 // pred_check
      _
    $region39: #{tpu_custom_call.1} parent=1 // pred_check_branch
      %467 = sbr.rel (0) target = $region41
    $region40: #{tpu_custom_call.1} parent=1 // pred_region
      %469 = vsyncadd [#allocation7], 0
      %s471 = sshll.u32 [#allocation6], 4
      %s472 = int_to_ptr.vmem [resolvable:$true] %s471
      %s473 = sshll.u32 %s8, 4
      %s474 = int_to_ptr.hbm [resolvable:$true] %s473
      %476 = dma.vmem_to_hbm [thread:$0]  %s472, 128, %s474, [#allocation7]
    $region41: #{tpu_custom_call.1} parent=1 // pred_fallthru
      _
    // Predicated region
    $region42: #{tpu_custom_call.1} parent=1 // pred_check
      _
    $region43: #{tpu_custom_call.1} parent=1 // pred_check_branch
      %478 = sbr.rel (0) target = $region45
    $region44: #{tpu_custom_call.1} parent=1 // pred_region
      %480 = dma.done [#allocation4], 128
    $region45: #{tpu_custom_call.1} parent=1 // pred_fallthru
      _
    // Predicated region
    $region46: #{tpu_custom_call.1} parent=1 // pred_check
      _
    $region47: #{tpu_custom_call.1} parent=1 // pred_check_branch
      %482 = sbr.rel (0) target = $region49
    $region48: #{tpu_custom_call.1} parent=1 // pred_region
      %484 = dma.done [#allocation7], 128
    $region49: #{tpu_custom_call.1} parent=1 // pred_fallthru
      _
    %485 = vsyncpa [#allocation3], 1
    %486 = vsyncpa [#allocation4], 1
    %487 = vsyncpa [#allocation7], 1

</llo_original>
